<compile_context>
chip_gen: v7x
topology: tpu7x:2x2x1
jax: 0.10.0
libtpu: 0.0.40
codegen_flags: <defaults>
</compile_context>

<pallas_src>
import jax
import jax.numpy as jnp
from jax import lax
from jax.experimental import pallas as pl
from jax.experimental.pallas import tpu as pltpu


def _round_up(x, m):
    return ((x + m - 1) // m) * m


def ncf_mlp_kernel(x_ref,
                   w1_ref, b1_ref,
                   w2_ref, b2_ref,
                   w3_ref, b3_ref,
                   w4t_ref, b4_ref,
                   out_ref):
    # Layer 1: Linear(2D -> 128) + ReLU.  bf16 operands, f32 accumulation.
    h = jnp.dot(x_ref[...], w1_ref[...], preferred_element_type=jnp.float32)
    h = jnp.maximum(h + b1_ref[...], 0.0).astype(jnp.bfloat16)            # (TB, 128)

    # Layer 2: Linear(128 -> 64) + ReLU.
    h = jnp.dot(h, w2_ref[...], preferred_element_type=jnp.float32)
    h = jnp.maximum(h + b2_ref[...], 0.0).astype(jnp.bfloat16)            # (TB, 64)

    # Layer 3: Linear(64 -> 32) + ReLU.
    h = jnp.dot(h, w3_ref[...], preferred_element_type=jnp.float32)
    h = jnp.maximum(h + b3_ref[...], 0.0).astype(jnp.bfloat16)            # (TB, 32)

    # Layer 4: Linear(32 -> 1), emitted lane-major as (1, TB):
    #   y[0, n] = sum_k w4t[0, k] * h[n, k]  ==  (h @ W4)[n, 0]
    y = lax.dot_general(w4t_ref[...], h,
                        dimension_numbers=(((1,), (1,)), ((), ())),
                        preferred_element_type=jnp.float32)               # (1, TB)
    out_ref[...] = y + b4_ref[0, 0]


def ncf_forward(user_indices, item_indices, params, *, tile_b=2048):
    """Equivalent of NCFModel.forward (returns shape (B,) like .squeeze())."""
    user_table = params["user_embedding"]   # (num_users, D)
    item_table = params["item_embedding"]   # (num_items, D)
    B = user_indices.shape[0]
    D = user_table.shape[1]

    # Embedding lookups + concat + bf16 cast (one XLA fusion writing (B, 2D)
    # bf16).  See TODO above for moving the gather into the kernel.
    ue = jnp.take(user_table, user_indices, axis=0)
    ie = jnp.take(item_table, item_indices, axis=0)
    x = jnp.concatenate([ue, ie], axis=-1).astype(jnp.bfloat16)            # (B, 2D)

    # ---- batch tiling (lane-dense 128-multiples; covers bf16 sublane pack) ---
    b128 = _round_up(B, 128)
    tb = min(_round_up(tile_b, 128), b128)
    # v7x: keep >= 2 tiles on the "parallel" batch axis when the batch is big
    # enough, so both TensorCores get work.
    n_blocks = b128 // 128
    if n_blocks >= 2 and b128 // tb < 2:
        tb = ((n_blocks + 1) // 2) * 128
    b_pad = _round_up(B, tb)
    if b_pad != B:
        x = jnp.pad(x, ((0, b_pad - B), (0, 0)))
    n_tiles = b_pad // tb

    # ---- weights: bf16 MXU operands, f32 biases ------------------------------
    w1 = params["w1"].astype(jnp.bfloat16)                 # (2D, 128)
    w2 = params["w2"].astype(jnp.bfloat16)                 # (128, 64)
    w3 = params["w3"].astype(jnp.bfloat16)                 # (64, 32)
    w4t = jnp.transpose(params["w4"]).astype(jnp.bfloat16)  # (1, 32)
    b1 = params["b1"]                                       # (1, 128) f32
    b2 = params["b2"]                                       # (1, 64)  f32
    b3 = params["b3"]                                       # (1, 32)  f32
    b4 = params["b4"].reshape(1, 1)                         # (1, 1)   f32 -> SMEM

    def const_spec(shape):
        n = len(shape)
        return pl.BlockSpec(shape, lambda i, _n=n: (0,) * _n)

    out = pl.pallas_call(
        ncf_mlp_kernel,
        out_shape=jax.ShapeDtypeStruct((1, b_pad), jnp.float32),
        grid_spec=pltpu.PrefetchScalarGridSpec(
            num_scalar_prefetch=0,
            grid=(n_tiles,),
            in_specs=[
                pl.BlockSpec((tb, 2 * D), lambda i: (i, 0)),          # streamed x
                const_spec(w1.shape), const_spec(b1.shape),           # resident
                const_spec(w2.shape), const_spec(b2.shape),
                const_spec(w3.shape), const_spec(b3.shape),
                const_spec(w4t.shape),
                pl.BlockSpec(memory_space=pltpu.MemorySpace.SMEM),    # b4 scalar
            ],
            out_specs=pl.BlockSpec((1, tb), lambda i: (0, i)),        # lane-major
        ),
        compiler_params=pltpu.CompilerParams(
            dimension_semantics=("parallel",)),
    )(x, w1, b1, w2, b2, w3, b3, w4t, b4)

    # (1, B_pad) -> (B,)   (PyTorch .squeeze()); padded tail rows are discarded.
    return out.reshape(b_pad)[:B]


def init_params(key, num_users, num_items, embedding_dim):
    ks = jax.random.split(key, 10)

    def linear(kw, kb, fan_in, fan_out):
        bound = 1.0 / jnp.sqrt(fan_in)
        w = jax.random.uniform(kw, (fan_in, fan_out), jnp.float32, -bound, bound)
        b = jax.random.uniform(kb, (1, fan_out), jnp.float32, -bound, bound)
        return w, b

    w1, b1 = linear(ks[2], ks[3], embedding_dim * 2, 128)
    w2, b2 = linear(ks[4], ks[5], 128, 64)
    w3, b3 = linear(ks[6], ks[7], 64, 32)
    w4, b4 = linear(ks[8], ks[9], 32, 1)

    return {
        "user_embedding": jax.random.normal(ks[0], (num_users, embedding_dim),
                                            jnp.float32),
        "item_embedding": jax.random.normal(ks[1], (num_items, embedding_dim),
                                            jnp.float32),
        "w1": w1, "b1": b1,
        "w2": w2, "b2": b2,
        "w3": w3, "b3": b3,
        "w4": w4, "b4": b4,
    }


def ncf_reference(user_indices, item_indices, params):
    """Pure-JAX f32 reference for correctness checking."""
    ue = jnp.take(params["user_embedding"], user_indices, axis=0)
    ie = jnp.take(params["item_embedding"], item_indices, axis=0)
    x = jnp.concatenate([ue, ie], axis=-1)
    h = jnp.maximum(x @ params["w1"] + params["b1"], 0.0)
    h = jnp.maximum(h @ params["w2"] + params["b2"], 0.0)
    h = jnp.maximum(h @ params["w3"] + params["b3"], 0.0)
    return (h @ params["w4"] + params["b4"]).reshape(-1)


if __name__ == "__main__":
    num_users, num_items, embedding_dim = 50, 40, 32
    batch = 8

    key = jax.random.PRNGKey(0)
    kp, ku, ki = jax.random.split(key, 3)
    params = init_params(kp, num_users, num_items, embedding_dim)

    user_indices = jax.random.randint(ku, (batch,), 0, num_users, jnp.int32)
    item_indices = jax.random.randint(ki, (batch,), 0, num_items, jnp.int32)

    out = ncf_forward(user_indices, item_indices, params)
    out = jax.block_until_ready(out)

    ref = ncf_reference(user_indices, item_indices, params)
    assert out.shape == (batch,), out.shape
    # bf16 MXU operands (f32 accumulation) vs pure-f32 reference -> loose tol.
    assert jnp.allclose(out, ref, atol=3e-2, rtol=3e-2), (out, ref)

    print("KERNEL_OK")
</pallas_src>

<mosaic_0001>
module attributes {stable_mosaic.version = 11 : i64} {
  func.func @ncf_mlp_kernel(%arg0: i32, %arg1: memref<128x64xbf16, #tpu.memory_space<vmem>>, %arg2: memref<64x128xbf16, #tpu.memory_space<vmem>>, %arg3: memref<1x128xf32, #tpu.memory_space<vmem>>, %arg4: memref<128x64xbf16, #tpu.memory_space<vmem>>, %arg5: memref<1x64xf32, #tpu.memory_space<vmem>>, %arg6: memref<64x32xbf16, #tpu.memory_space<vmem>>, %arg7: memref<1x32xf32, #tpu.memory_space<vmem>>, %arg8: memref<1x32xbf16, #tpu.memory_space<vmem>>, %arg9: memref<1x1xf32, #tpu.memory_space<smem>>, %arg10: memref<1x128xf32, #tpu.memory_space<vmem>>) attributes {dimension_semantics = [#tpu.dimension_semantics<parallel>], iteration_bounds = array<i64: 1>, scalar_prefetch = 0 : i64, scratch_operands = 0 : i64, tpu.core_type = #tpu.core_type<tc>, window_params = [{transform_indices = @transform_0, window_bounds = array<i64: 128, 64>}, {pipeline_mode = #tpu.pipeline_mode<synchronous>, transform_indices = @transform_1, window_bounds = array<i64: 64, 128>}, {pipeline_mode = #tpu.pipeline_mode<synchronous>, transform_indices = @transform_2, window_bounds = array<i64: 1, 128>}, {pipeline_mode = #tpu.pipeline_mode<synchronous>, transform_indices = @transform_3, window_bounds = array<i64: 128, 64>}, {pipeline_mode = #tpu.pipeline_mode<synchronous>, transform_indices = @transform_4, window_bounds = array<i64: 1, 64>}, {pipeline_mode = #tpu.pipeline_mode<synchronous>, transform_indices = @transform_5, window_bounds = array<i64: 64, 32>}, {pipeline_mode = #tpu.pipeline_mode<synchronous>, transform_indices = @transform_6, window_bounds = array<i64: 1, 32>}, {pipeline_mode = #tpu.pipeline_mode<synchronous>, transform_indices = @transform_7, window_bounds = array<i64: 1, 32>}, {transform_indices = @transform_8, window_bounds = array<i64: 1, 1>}, {transform_indices = @transform_9, window_bounds = array<i64: 1, 128>}]} {
    %c0 = arith.constant 0 : index
    %c0_0 = arith.constant 0 : index
    %0 = vector.load %arg1[%c0, %c0_0] : memref<128x64xbf16, #tpu.memory_space<vmem>>, vector<128x64xbf16>
    %c0_1 = arith.constant 0 : index
    %c0_2 = arith.constant 0 : index
    %1 = vector.load %arg2[%c0_1, %c0_2] : memref<64x128xbf16, #tpu.memory_space<vmem>>, vector<64x128xbf16>
    %cst = arith.constant dense<0.000000e+00> : vector<128x128xf32>
    %2 = tpu.matmul %0, %1, %cst {dimension_numbers = #tpu.dot_dimension_numbers<[1], [0], [0], [1], [0, 0, 1, 1], [], []>} : vector<128x64xbf16>, vector<64x128xbf16>, vector<128x128xf32> -> vector<128x128xf32>
    %c0_3 = arith.constant 0 : index
    %c0_4 = arith.constant 0 : index
    %3 = vector.load %arg3[%c0_3, %c0_4] : memref<1x128xf32, #tpu.memory_space<vmem>>, vector<1x128xf32>
    %4 = vector.broadcast %3 : vector<1x128xf32> to vector<128x128xf32>
    %5 = arith.addf %2, %4 : vector<128x128xf32>
    %cst_5 = arith.constant 0.000000e+00 : f32
    %6 = vector.broadcast %cst_5 : f32 to vector<128x128xf32>
    %7 = arith.maximumf %5, %6 : vector<128x128xf32>
    %8 = arith.truncf %7 : vector<128x128xf32> to vector<128x128xbf16>
    %c0_6 = arith.constant 0 : index
    %c0_7 = arith.constant 0 : index
    %9 = vector.load %arg4[%c0_6, %c0_7] : memref<128x64xbf16, #tpu.memory_space<vmem>>, vector<128x64xbf16>
    %cst_8 = arith.constant dense<0.000000e+00> : vector<128x64xf32>
    %10 = tpu.matmul %8, %9, %cst_8 {dimension_numbers = #tpu.dot_dimension_numbers<[1], [0], [0], [1], [0, 0, 1, 1], [], []>} : vector<128x128xbf16>, vector<128x64xbf16>, vector<128x64xf32> -> vector<128x64xf32>
    %c0_9 = arith.constant 0 : index
    %c0_10 = arith.constant 0 : index
    %11 = vector.load %arg5[%c0_9, %c0_10] : memref<1x64xf32, #tpu.memory_space<vmem>>, vector<1x64xf32>
    %12 = vector.broadcast %11 : vector<1x64xf32> to vector<128x64xf32>
    %13 = arith.addf %10, %12 : vector<128x64xf32>
    %cst_11 = arith.constant 0.000000e+00 : f32
    %14 = vector.broadcast %cst_11 : f32 to vector<128x64xf32>
    %15 = arith.maximumf %13, %14 : vector<128x64xf32>
    %16 = arith.truncf %15 : vector<128x64xf32> to vector<128x64xbf16>
    %c0_12 = arith.constant 0 : index
    %c0_13 = arith.constant 0 : index
    %17 = vector.load %arg6[%c0_12, %c0_13] : memref<64x32xbf16, #tpu.memory_space<vmem>>, vector<64x32xbf16>
    %cst_14 = arith.constant dense<0.000000e+00> : vector<128x32xf32>
    %18 = tpu.matmul %16, %17, %cst_14 {dimension_numbers = #tpu.dot_dimension_numbers<[1], [0], [0], [1], [0, 0, 1, 1], [], []>} : vector<128x64xbf16>, vector<64x32xbf16>, vector<128x32xf32> -> vector<128x32xf32>
    %c0_15 = arith.constant 0 : index
    %c0_16 = arith.constant 0 : index
    %19 = vector.load %arg7[%c0_15, %c0_16] : memref<1x32xf32, #tpu.memory_space<vmem>>, vector<1x32xf32>
    %20 = vector.broadcast %19 : vector<1x32xf32> to vector<128x32xf32>
    %21 = arith.addf %18, %20 : vector<128x32xf32>
    %cst_17 = arith.constant 0.000000e+00 : f32
    %22 = vector.broadcast %cst_17 : f32 to vector<128x32xf32>
    %23 = arith.maximumf %21, %22 : vector<128x32xf32>
    %24 = arith.truncf %23 : vector<128x32xf32> to vector<128x32xbf16>
    %c0_18 = arith.constant 0 : index
    %c0_19 = arith.constant 0 : index
    %25 = vector.load %arg8[%c0_18, %c0_19] : memref<1x32xbf16, #tpu.memory_space<vmem>>, vector<1x32xbf16>
    %cst_20 = arith.constant dense<0.000000e+00> : vector<1x128xf32>
    %26 = tpu.matmul %25, %24, %cst_20 {dimension_numbers = #tpu.dot_dimension_numbers<[1], [1], [0], [0], [0, 0, 1, 0], [], []>} : vector<1x32xbf16>, vector<128x32xbf16>, vector<1x128xf32> -> vector<1x128xf32>
    %c0_21 = arith.constant 0 : index
    %c0_22 = arith.constant 0 : index
    %27 = memref.load %arg9[%c0_21, %c0_22] : memref<1x1xf32, #tpu.memory_space<smem>>
    %28 = vector.broadcast %27 : f32 to vector<1x128xf32>
    %29 = arith.addf %26, %28 : vector<1x128xf32>
    %c0_23 = arith.constant 0 : index
    %c0_24 = arith.constant 0 : index
    %30 = vector.load %arg10[%c0_23, %c0_24] : memref<1x128xf32, #tpu.memory_space<vmem>>, vector<1x128xf32>
    tpu.vector_store %arg10[%c0_23, %c0_24], %29 {strides = array<i32>} : memref<1x128xf32, #tpu.memory_space<vmem>>, vector<1x128xf32>,
    return
  }
  func.func @transform_0(%arg0: i32) -> (i32, i32) {
    %c0_i32 = arith.constant 0 : i32
    %c0_i32_0 = arith.constant 0 : i32
    return %arg0, %c0_i32 : i32, i32
  }
  func.func @transform_1(%arg0: i32) -> (i32, i32) {
    %c0_i32 = arith.constant 0 : i32
    %c0_i32_0 = arith.constant 0 : i32
    %c0_i32_1 = arith.constant 0 : i32
    return %c0_i32, %c0_i32_0 : i32, i32
  }
  func.func @transform_2(%arg0: i32) -> (i32, i32) {
    %c0_i32 = arith.constant 0 : i32
    %c0_i32_0 = arith.constant 0 : i32
    %c0_i32_1 = arith.constant 0 : i32
    return %c0_i32, %c0_i32_0 : i32, i32
  }
  func.func @transform_3(%arg0: i32) -> (i32, i32) {
    %c0_i32 = arith.constant 0 : i32
    %c0_i32_0 = arith.constant 0 : i32
    %c0_i32_1 = arith.constant 0 : i32
    return %c0_i32, %c0_i32_0 : i32, i32
  }
  func.func @transform_4(%arg0: i32) -> (i32, i32) {
    %c0_i32 = arith.constant 0 : i32
    %c0_i32_0 = arith.constant 0 : i32
    %c0_i32_1 = arith.constant 0 : i32
    return %c0_i32, %c0_i32_0 : i32, i32
  }
  func.func @transform_5(%arg0: i32) -> (i32, i32) {
    %c0_i32 = arith.constant 0 : i32
    %c0_i32_0 = arith.constant 0 : i32
    %c0_i32_1 = arith.constant 0 : i32
    return %c0_i32, %c0_i32_0 : i32, i32
  }
  func.func @transform_6(%arg0: i32) -> (i32, i32) {
    %c0_i32 = arith.constant 0 : i32
    %c0_i32_0 = arith.constant 0 : i32
    %c0_i32_1 = arith.constant 0 : i32
    return %c0_i32, %c0_i32_0 : i32, i32
  }
  func.func @transform_7(%arg0: i32) -> (i32, i32) {
    %c0_i32 = arith.constant 0 : i32
    %c0_i32_0 = arith.constant 0 : i32
    %c0_i32_1 = arith.constant 0 : i32
    return %c0_i32, %c0_i32_0 : i32, i32
  }
  func.func @transform_8(%arg0: i32) -> (i32, i32) {
    %c0_i32 = arith.constant 0 : i32
    %c0_i32_0 = arith.constant 0 : i32
    %c0_i32_1 = arith.constant 0 : i32
    return %c0_i32, %c0_i32_0 : i32, i32
  }
  func.func @transform_9(%arg0: i32) -> (i32, i32) {
    %c0_i32 = arith.constant 0 : i32
    %c0_i32_0 = arith.constant 0 : i32
    return %c0_i32, %arg0 : i32, i32
  }
}

</mosaic_0001>

<llo_original>
// kernel: tpu_custom_call.1
$region0: #{tpu_custom_call.1}
  #allocation0 [shape = 'u32[]', space=smem, size = 0x4, offset = 0x4, fixed_abs, tag = 'smem constant byte address 0x4 - core index']
  #allocation1 [shape = 'u32[144,128]{1,0:T(1,128)}', space=vmem, size = 0x12000, scoped, tag = 'internal scratch']
  #allocation2 [shape = 'f32[1,1]{1,0:T(1,128)S(6)}', space=smem, size = 0x200, scoped, tag = 'scoped memory for tpu_custom_call.1']
  %s0 = inlined_call_operand.vmem [shape: bf16[128,64], index: 0, kind: input, shape index: {}]
  %s1 = inlined_call_operand.vmem [shape: bf16[64,128], index: 1, kind: input, shape index: {}]
  %s2 = inlined_call_operand.vmem [shape: f32[1,128], index: 2, kind: input, shape index: {}]
  %s3 = inlined_call_operand.vmem [shape: bf16[128,64], index: 3, kind: input, shape index: {}]
  %s4 = inlined_call_operand.vmem [shape: f32[1,64], index: 4, kind: input, shape index: {}]
  %s5 = inlined_call_operand.vmem [shape: bf16[64,32], index: 5, kind: input, shape index: {}]
  %s6 = inlined_call_operand.vmem [shape: f32[1,32], index: 6, kind: input, shape index: {}]
  %s7 = inlined_call_operand.vmem [shape: bf16[1,32], index: 7, kind: input, shape index: {}]
  %s8 = inlined_call_operand.<no memory space> [shape: f32[1,1], index: 8, kind: input, shape index: {}]
  %s9 = inlined_call_operand.hbm [shape: f32[1,128], index: 9, kind: output, shape index: {}]
  %s10 = sld [smem:[#allocation0]]
  $region46: #{tpu_custom_call.1} parent=0
    _
  %s12 = ssub.s32 1, %s10
  %s13 = scalar_select 0, %s12, %s10
  %14 = sst [smem:[#allocation2]] %s8
  $region1: #{tpu_custom_call.1} parent=0
    #allocation3 [shape = 'u8[512]{0}', space=vmem, size = 0x400, scoped, tag = 'output window, operand 0, single buffered']
    #allocation4 [shape = 's32[1]{0}', space=sflag, size = 0x4, scoped, tag = 'scoped memory for tpu_custom_call.1']
    %15 = vsyncpa [#allocation4], 0
    // Predicated region
    $region2: #{tpu_custom_call.1} parent=1 // pred_check
      _
    $region3: #{tpu_custom_call.1} parent=1 // pred_check_branch
      %17 = sbr.rel (0) target = $region5
    $region4: #{tpu_custom_call.1} parent=1 // pred_region
      _
    $region5: #{tpu_custom_call.1} parent=1 // pred_fallthru
      _
    // Predicated region
    $region6: #{tpu_custom_call.1} parent=1 // pred_check
      _
    $region7: #{tpu_custom_call.1} parent=1 // pred_check_branch
      %19 = sbr.rel (0) target = $region9
    $region8: #{tpu_custom_call.1} parent=1 // pred_region
      _
    $region9: #{tpu_custom_call.1} parent=1 // pred_fallthru
      _
    // Predicated region
    $region10: #{tpu_custom_call.1} parent=1 // pred_check
      _
    $region11: #{tpu_custom_call.1} parent=1 // pred_check_branch
      %21 = sbr.rel (0) target = $region13
    $region12: #{tpu_custom_call.1} parent=1 // pred_region
      _
    $region13: #{tpu_custom_call.1} parent=1 // pred_fallthru
      _
    // Predicated region
    $region14: #{tpu_custom_call.1} parent=1 // pred_check
      _
    $region15: #{tpu_custom_call.1} parent=1 // pred_check_branch
      %23 = sbr.rel (0) target = $region17
    $region16: #{tpu_custom_call.1} parent=1 // pred_region
      _
    $region17: #{tpu_custom_call.1} parent=1 // pred_fallthru
      _
    // Predicated region
    $region18: #{tpu_custom_call.1} parent=1 // pred_check
      _
    $region19: #{tpu_custom_call.1} parent=1 // pred_check_branch
      %25 = sbr.rel (0) target = $region21
    $region20: #{tpu_custom_call.1} parent=1 // pred_region
      _
    $region21: #{tpu_custom_call.1} parent=1 // pred_fallthru
      _
    // Predicated region
    $region22: #{tpu_custom_call.1} parent=1 // pred_check
      _
    $region23: #{tpu_custom_call.1} parent=1 // pred_check_branch
      %27 = sbr.rel (0) target = $region25
    $region24: #{tpu_custom_call.1} parent=1 // pred_region
      _
    $region25: #{tpu_custom_call.1} parent=1 // pred_fallthru
      _
    // Predicated region
    $region26: #{tpu_custom_call.1} parent=1 // pred_check
      _
    $region27: #{tpu_custom_call.1} parent=1 // pred_check_branch
      %29 = sbr.rel (0) target = $region29
    $region28: #{tpu_custom_call.1} parent=1 // pred_region
      _
    $region29: #{tpu_custom_call.1} parent=1 // pred_fallthru
      _
    // Predicated region
    $region30: #{tpu_custom_call.1} parent=1 // pred_check
      _
    $region31: #{tpu_custom_call.1} parent=1 // pred_check_branch
      %31 = sbr.rel (0) target = $region33
    $region32: #{tpu_custom_call.1} parent=1 // pred_region
      _
    $region33: #{tpu_custom_call.1} parent=1 // pred_fallthru
      _
    // Predicated region
    $region34: #{tpu_custom_call.1} parent=1 // pred_check
      _
    $region35: #{tpu_custom_call.1} parent=1 // pred_check_branch
      %33 = sbr.rel (0) target = $region37
    $region36: #{tpu_custom_call.1} parent=1 // pred_region
      _
    $region37: #{tpu_custom_call.1} parent=1 // pred_fallthru
      _
    %v35 = vld [vmem:[%s0] sm:$0xf]
    %v36 = vld [vmem:[%s0 + $0x4] sm:$0xf]
    %v37 = vld [vmem:[%s0 + $0x8] sm:$0xf]
    %v38 = vld [vmem:[%s0 + $0xc] sm:$0xf]
    %v39 = vld [vmem:[%s0 + $0x10] sm:$0xf]
    %v40 = vld [vmem:[%s0 + $0x14] sm:$0xf]
    %v41 = vld [vmem:[%s0 + $0x18] sm:$0xf]
    %v42 = vld [vmem:[%s0 + $0x1c] sm:$0xf]
    %v43 = vld [vmem:[%s0 + $0x20] sm:$0xf]
    %v44 = vld [vmem:[%s0 + $0x24] sm:$0xf]
    %v45 = vld [vmem:[%s0 + $0x28] sm:$0xf]
    %v46 = vld [vmem:[%s0 + $0x2c] sm:$0xf]
    %v47 = vld [vmem:[%s0 + $0x30] sm:$0xf]
    %v48 = vld [vmem:[%s0 + $0x34] sm:$0xf]
    %v49 = vld [vmem:[%s0 + $0x38] sm:$0xf]
    %v50 = vld [vmem:[%s0 + $0x3c] sm:$0xf]
    %v51 = vld [vmem:[%s1] sm:$0xf]
    %v52 = vld [vmem:[%s1 + $0x4] sm:$0xf]
    %v53 = vld [vmem:[%s1 + $0x8] sm:$0xf]
    %v54 = vld [vmem:[%s1 + $0xc] sm:$0xf]
    %v55 = vld [vmem:[%s1 + $0x10] sm:$0xf]
    %v56 = vld [vmem:[%s1 + $0x14] sm:$0xf]
    %v57 = vld [vmem:[%s1 + $0x18] sm:$0xf]
    %v58 = vld [vmem:[%s1 + $0x1c] sm:$0xf]
    %v59 = vld [vmem:[%s2] sm:$0x1]
    %v61 = vlaneseq
    %v62 = vshrl.u32 %v61, 7
    %v63 = vsub.s32 0, %v62
    %v64 = vrot.slane %v59, %v63
    %v82 = vunpack.c.l.b16 %v35
    %v83 = vunpack.c.l.b16 %v36
    %v84 = vunpack.c.l.b16 %v37
    %v85 = vunpack.c.l.b16 %v38
    %v86 = vunpack.c.l.b16 %v39
    %v87 = vunpack.c.l.b16 %v40
    %v88 = vunpack.c.l.b16 %v41
    %v89 = vunpack.c.l.b16 %v42
    %v90 = vunpack.c.l.b16 %v43
    %v91 = vunpack.c.l.b16 %v44
    %v92 = vunpack.c.l.b16 %v45
    %v93 = vunpack.c.l.b16 %v46
    %v94 = vunpack.c.l.b16 %v47
    %v95 = vunpack.c.l.b16 %v48
    %v96 = vunpack.c.l.b16 %v49
    %v97 = vunpack.c.l.b16 %v50
    %v98 = vpack.c.b16 %v83, %v82
    %v99 = vpack.c.b16 %v85, %v84
    %v100 = vpack.c.b16 %v87, %v86
    %v101 = vpack.c.b16 %v89, %v88
    %v102 = vpack.c.b16 %v91, %v90
    %v103 = vpack.c.b16 %v93, %v92
    %v104 = vpack.c.b16 %v95, %v94
    %v105 = vpack.c.b16 %v97, %v96
    %v114 = vunpack.c.l.b16 %v51
    %v115 = vunpack.c.l.b16 %v52
    %v116 = vunpack.c.l.b16 %v53
    %v117 = vunpack.c.l.b16 %v54
    %v118 = vunpack.c.l.b16 %v55
    %v119 = vunpack.c.l.b16 %v56
    %v120 = vunpack.c.l.b16 %v57
    %v121 = vunpack.c.l.b16 %v58
    %v122 = vpack.c.b16 %v115, %v114
    %v123 = vpack.c.b16 %v117, %v116
    %v124 = vpack.c.b16 %v119, %v118
    %v125 = vpack.c.b16 %v121, %v120
    %vm130 = vcmask 523264
    %v132 = vsel %vm130, %v98, 0
    %v135 = vsel %vm130, %v99, 0
    %v138 = vsel %vm130, %v100, 0
    %v141 = vsel %vm130, %v101, 0
    %v144 = vsel %vm130, %v102, 0
    %v147 = vsel %vm130, %v103, 0
    %v150 = vsel %vm130, %v104, 0
    %v153 = vsel %vm130, %v105, 0
    %155 = vmatprep.subr.bf16.mxu0 0
    %156 = vmatpush1.bf16.msra.mxu0 %v122
    %157 = vmatprep.subr.bf16.mxu0 0
    %158 = vmatpush1.bf16.msra.mxu0 %v123
    %159 = vmatprep.subr.bf16.mxu0 0
    %160 = vmatpush1.bf16.msra.mxu0 %v124
    %161 = vmatprep.subr.bf16.mxu0 0
    %162 = vmatpush1.bf16.msra.mxu0 %v125
    %163 = vmatprep.subr.bf16.mxu0 0
    %164 = vmatpush1.bf16.msra.mxu0 0
    %165 = vmatprep.subr.bf16.mxu0 0
    %166 = vmatpush1.bf16.msra.mxu0 0
    %167 = vmatprep.subr.bf16.mxu0 0
    %168 = vmatpush1.bf16.msra.mxu0 0
    %169 = vmatprep.subr.bf16.mxu0 0
    %170 = vmatpush1.bf16.msra.mxu0 0
    %171 = vmatprep.subr.bf16.mxu0 0
    %172 = vmatpush1.bf16.msra.mxu0 0
    %173 = vmatprep.subr.bf16.mxu0 0
    %174 = vmatpush1.bf16.msra.mxu0 0
    %175 = vmatprep.subr.bf16.mxu0 0
    %176 = vmatpush1.bf16.msra.mxu0 0
    %177 = vmatprep.subr.bf16.mxu0 0
    %178 = vmatpush1.bf16.msra.mxu0 0
    %179 = vmatprep.subr.bf16.mxu0 0
    %180 = vmatpush1.bf16.msra.mxu0 0
    %181 = vmatprep.subr.bf16.mxu0 0
    %182 = vmatpush1.bf16.msra.mxu0 0
    %183 = vmatprep.subr.bf16.mxu0 0
    %184 = vmatpush1.bf16.msra.mxu0 0
    %185 = vmatprep.subr.bf16.mxu0 0
    %186 = vmatpush1.bf16.msra.mxu0 0
    %187 = vmatprep.mubr.bf16.mxu0 0
    %188 = vmatmul.mubr.bf16.gmra.mrb[0].mxu0 %v132
    %v189 = vpop.f32.mrb[0].mxu0
    %v190 = vadd.f32 %v64, %v189
    %v191 = vpop.f32.mrb[0].mxu0
    %v192 = vpop.f32.mrb[0].mxu0
    %v193 = vadd.f32 %v64, %v192
    %v194 = vpop.f32.mrb[0].mxu0
    %195 = vmatprep.mubr.bf16.mxu0 0
    %196 = vmatmul.mubr.bf16.gmra.mrb[0].mxu0 %v135
    %v197 = vpop.f32.mrb[0].mxu0
    %v198 = vadd.f32 %v64, %v197
    %v199 = vpop.f32.mrb[0].mxu0
    %v200 = vpop.f32.mrb[0].mxu0
    %v201 = vadd.f32 %v64, %v200
    %v202 = vpop.f32.mrb[0].mxu0
    %203 = vmatprep.mubr.bf16.mxu0 0
    %204 = vmatmul.mubr.bf16.gmra.mrb[0].mxu0 %v138
    %v205 = vpop.f32.mrb[0].mxu0
    %v206 = vadd.f32 %v64, %v205
    %v207 = vpop.f32.mrb[0].mxu0
    %v208 = vpop.f32.mrb[0].mxu0
    %v209 = vadd.f32 %v64, %v208
    %v210 = vpop.f32.mrb[0].mxu0
    %211 = vmatprep.mubr.bf16.mxu0 0
    %212 = vmatmul.mubr.bf16.gmra.mrb[0].mxu0 %v141
    %v213 = vpop.f32.mrb[0].mxu0
    %v214 = vadd.f32 %v64, %v213
    %v215 = vpop.f32.mrb[0].mxu0
    %v216 = vpop.f32.mrb[0].mxu0
    %v217 = vadd.f32 %v64, %v216
    %v218 = vpop.f32.mrb[0].mxu0
    %219 = vmatprep.mubr.bf16.mxu0 0
    %220 = vmatmul.mubr.bf16.gmra.mrb[0].mxu0 %v144
    %v221 = vpop.f32.mrb[0].mxu0
    %v222 = vadd.f32 %v64, %v221
    %v223 = vpop.f32.mrb[0].mxu0
    %v224 = vpop.f32.mrb[0].mxu0
    %v225 = vadd.f32 %v64, %v224
    %v226 = vpop.f32.mrb[0].mxu0
    %227 = vmatprep.mubr.bf16.mxu0 0
    %228 = vmatmul.mubr.bf16.gmra.mrb[0].mxu0 %v147
    %v229 = vpop.f32.mrb[0].mxu0
    %v230 = vadd.f32 %v64, %v229
    %v231 = vpop.f32.mrb[0].mxu0
    %v232 = vpop.f32.mrb[0].mxu0
    %v233 = vadd.f32 %v64, %v232
    %v234 = vpop.f32.mrb[0].mxu0
    %235 = vmatprep.mubr.bf16.mxu0 0
    %236 = vmatmul.mubr.bf16.gmra.mrb[0].mxu0 %v150
    %v237 = vpop.f32.mrb[0].mxu0
    %v238 = vadd.f32 %v64, %v237
    %v239 = vpop.f32.mrb[0].mxu0
    %v240 = vpop.f32.mrb[0].mxu0
    %v241 = vadd.f32 %v64, %v240
    %v242 = vpop.f32.mrb[0].mxu0
    %243 = vmatprep.mubr.bf16.mxu0 0
    %244 = vmatmul.mubr.bf16.gmra.mrb[0].mxu0 %v153
    %v245 = vpop.f32.mrb[0].mxu0
    %v246 = vadd.f32 %v64, %v245
    %v247 = vpop.f32.mrb[0].mxu0
    %v248 = vpop.f32.mrb[0].mxu0
    %v249 = vadd.f32 %v64, %v248
    %v250 = vpop.f32.mrb[0].mxu0
    %251 = vdwg.mxu0
    %v252 = vmax.f32 %v190, 0.0
    %v253 = vmax.f32 %v193, 0.0
    %v254 = vmax.f32 %v198, 0.0
    %v255 = vmax.f32 %v201, 0.0
    %v256 = vmax.f32 %v206, 0.0
    %v257 = vmax.f32 %v209, 0.0
    %v258 = vmax.f32 %v214, 0.0
    %v259 = vmax.f32 %v217, 0.0
    %v260 = vmax.f32 %v222, 0.0
    %v261 = vmax.f32 %v225, 0.0
    %v262 = vmax.f32 %v230, 0.0
    %v263 = vmax.f32 %v233, 0.0
    %v264 = vmax.f32 %v238, 0.0
    %v265 = vmax.f32 %v241, 0.0
    %v266 = vmax.f32 %v246, 0.0
    %v267 = vmax.f32 %v249, 0.0
    %v268 = vpack.c.bf16 %v253, %v252
    %v269 = vpack.c.bf16 %v255, %v254
    %v270 = vpack.c.bf16 %v257, %v256
    %v271 = vpack.c.bf16 %v259, %v258
    %v272 = vpack.c.bf16 %v261, %v260
    %v273 = vpack.c.bf16 %v263, %v262
    %v274 = vpack.c.bf16 %v265, %v264
    %v275 = vpack.c.bf16 %v267, %v266
    %v276 = vld [vmem:[%s3] sm:$0xf]
    %v277 = vld [vmem:[%s3 + $0x4] sm:$0xf]
    %v278 = vld [vmem:[%s3 + $0x8] sm:$0xf]
    %v279 = vld [vmem:[%s3 + $0xc] sm:$0xf]
    %v280 = vld [vmem:[%s3 + $0x10] sm:$0xf]
    %v281 = vld [vmem:[%s3 + $0x14] sm:$0xf]
    %v282 = vld [vmem:[%s3 + $0x18] sm:$0xf]
    %v283 = vld [vmem:[%s3 + $0x1c] sm:$0xf]
    %v284 = vld [vmem:[%s3 + $0x20] sm:$0xf]
    %v285 = vld [vmem:[%s3 + $0x24] sm:$0xf]
    %v286 = vld [vmem:[%s3 + $0x28] sm:$0xf]
    %v287 = vld [vmem:[%s3 + $0x2c] sm:$0xf]
    %v288 = vld [vmem:[%s3 + $0x30] sm:$0xf]
    %v289 = vld [vmem:[%s3 + $0x34] sm:$0xf]
    %v290 = vld [vmem:[%s3 + $0x38] sm:$0xf]
    %v291 = vld [vmem:[%s3 + $0x3c] sm:$0xf]
    %v292 = vld [vmem:[%s4] sm:$0x1]
    %v294 = vlaneseq
    %v295 = vshrl.u32 %v294, 7
    %v296 = vsub.s32 0, %v295
    %v297 = vrot.slane %v292, %v296
    %v315 = vunpack.c.l.b16 %v276
    %v316 = vunpack.c.l.b16 %v277
    %v317 = vunpack.c.l.b16 %v278
    %v318 = vunpack.c.l.b16 %v279
    %v319 = vunpack.c.l.b16 %v280
    %v320 = vunpack.c.l.b16 %v281
    %v321 = vunpack.c.l.b16 %v282
    %v322 = vunpack.c.l.b16 %v283
    %v323 = vunpack.c.l.b16 %v284
    %v324 = vunpack.c.l.b16 %v285
    %v325 = vunpack.c.l.b16 %v286
    %v326 = vunpack.c.l.b16 %v287
    %v327 = vunpack.c.l.b16 %v288
    %v328 = vunpack.c.l.b16 %v289
    %v329 = vunpack.c.l.b16 %v290
    %v330 = vunpack.c.l.b16 %v291
    %v331 = vpack.c.b16 %v316, %v315
    %v332 = vpack.c.b16 %v318, %v317
    %v333 = vpack.c.b16 %v320, %v319
    %v334 = vpack.c.b16 %v322, %v321
    %v335 = vpack.c.b16 %v324, %v323
    %v336 = vpack.c.b16 %v326, %v325
    %v337 = vpack.c.b16 %v328, %v327
    %v338 = vpack.c.b16 %v330, %v329
    %347 = vmatprep.subr.bf16.mxu0 0
    %348 = vmatpush1.bf16.msra.mxu0 %v331
    %349 = vmatprep.subr.bf16.mxu0 0
    %350 = vmatpush1.bf16.msra.mxu0 %v332
    %351 = vmatprep.subr.bf16.mxu0 0
    %352 = vmatpush1.bf16.msra.mxu0 %v333
    %353 = vmatprep.subr.bf16.mxu0 0
    %354 = vmatpush1.bf16.msra.mxu0 %v334
    %355 = vmatprep.subr.bf16.mxu0 0
    %356 = vmatpush1.bf16.msra.mxu0 %v335
    %357 = vmatprep.subr.bf16.mxu0 0
    %358 = vmatpush1.bf16.msra.mxu0 %v336
    %359 = vmatprep.subr.bf16.mxu0 0
    %360 = vmatpush1.bf16.msra.mxu0 %v337
    %361 = vmatprep.subr.bf16.mxu0 0
    %362 = vmatpush1.bf16.msra.mxu0 %v338
    %363 = vmatprep.subr.bf16.mxu0 0
    %364 = vmatpush1.bf16.msra.mxu0 0
    %365 = vmatprep.subr.bf16.mxu0 0
    %366 = vmatpush1.bf16.msra.mxu0 0
    %367 = vmatprep.subr.bf16.mxu0 0
    %368 = vmatpush1.bf16.msra.mxu0 0
    %369 = vmatprep.subr.bf16.mxu0 0
    %370 = vmatpush1.bf16.msra.mxu0 0
    %371 = vmatprep.subr.bf16.mxu0 0
    %372 = vmatpush1.bf16.msra.mxu0 0
    %373 = vmatprep.subr.bf16.mxu0 0
    %374 = vmatpush1.bf16.msra.mxu0 0
    %375 = vmatprep.subr.bf16.mxu0 0
    %376 = vmatpush1.bf16.msra.mxu0 0
    %377 = vmatprep.subr.bf16.mxu0 0
    %378 = vmatpush1.bf16.msra.mxu0 0
    %379 = vmatprep.mubr.bf16.mxu0 0
    %380 = vmatmul.mubr.bf16.gmra.mrb[0].mxu0 %v268
    %v381 = vpop.f32.mrb[0].mxu0
    %v382 = vadd.f32 %v297, %v381
    %v383 = vpop.f32.mrb[0].mxu0
    %v384 = vpop.f32.mrb[0].mxu0
    %v385 = vadd.f32 %v297, %v384
    %v386 = vpop.f32.mrb[0].mxu0
    %387 = vmatprep.mubr.bf16.mxu0 0
    %388 = vmatmul.mubr.bf16.gmra.mrb[0].mxu0 %v269
    %v389 = vpop.f32.mrb[0].mxu0
    %v390 = vadd.f32 %v297, %v389
    %v391 = vpop.f32.mrb[0].mxu0
    %v392 = vpop.f32.mrb[0].mxu0
    %v393 = vadd.f32 %v297, %v392
    %v394 = vpop.f32.mrb[0].mxu0
    %395 = vmatprep.mubr.bf16.mxu0 0
    %396 = vmatmul.mubr.bf16.gmra.mrb[0].mxu0 %v270
    %v397 = vpop.f32.mrb[0].mxu0
    %v398 = vadd.f32 %v297, %v397
    %v399 = vpop.f32.mrb[0].mxu0
    %v400 = vpop.f32.mrb[0].mxu0
    %v401 = vadd.f32 %v297, %v400
    %v402 = vpop.f32.mrb[0].mxu0
    %403 = vmatprep.mubr.bf16.mxu0 0
    %404 = vmatmul.mubr.bf16.gmra.mrb[0].mxu0 %v271
    %v405 = vpop.f32.mrb[0].mxu0
    %v406 = vadd.f32 %v297, %v405
    %v407 = vpop.f32.mrb[0].mxu0
    %v408 = vpop.f32.mrb[0].mxu0
    %v409 = vadd.f32 %v297, %v408
    %v410 = vpop.f32.mrb[0].mxu0
    %411 = vmatprep.mubr.bf16.mxu0 0
    %412 = vmatmul.mubr.bf16.gmra.mrb[0].mxu0 %v272
    %v413 = vpop.f32.mrb[0].mxu0
    %v414 = vadd.f32 %v297, %v413
    %v415 = vpop.f32.mrb[0].mxu0
    %v416 = vpop.f32.mrb[0].mxu0
    %v417 = vadd.f32 %v297, %v416
    %v418 = vpop.f32.mrb[0].mxu0
    %419 = vmatprep.mubr.bf16.mxu0 0
    %420 = vmatmul.mubr.bf16.gmra.mrb[0].mxu0 %v273
    %v421 = vpop.f32.mrb[0].mxu0
    %v422 = vadd.f32 %v297, %v421
    %v423 = vpop.f32.mrb[0].mxu0
    %v424 = vpop.f32.mrb[0].mxu0
    %v425 = vadd.f32 %v297, %v424
    %v426 = vpop.f32.mrb[0].mxu0
    %427 = vmatprep.mubr.bf16.mxu0 0
    %428 = vmatmul.mubr.bf16.gmra.mrb[0].mxu0 %v274
    %v429 = vpop.f32.mrb[0].mxu0
    %v430 = vadd.f32 %v297, %v429
    %v431 = vpop.f32.mrb[0].mxu0
    %v432 = vpop.f32.mrb[0].mxu0
    %v433 = vadd.f32 %v297, %v432
    %v434 = vpop.f32.mrb[0].mxu0
    %435 = vmatprep.mubr.bf16.mxu0 0
    %436 = vmatmul.mubr.bf16.gmra.mrb[0].mxu0 %v275
    %v437 = vpop.f32.mrb[0].mxu0
    %v438 = vadd.f32 %v297, %v437
    %v439 = vpop.f32.mrb[0].mxu0
    %v440 = vpop.f32.mrb[0].mxu0
    %v441 = vadd.f32 %v297, %v440
    %v442 = vpop.f32.mrb[0].mxu0
    %443 = vdwg.mxu0
    %v444 = vmax.f32 %v382, 0.0
    %v445 = vmax.f32 %v385, 0.0
    %v446 = vmax.f32 %v390, 0.0
    %v447 = vmax.f32 %v393, 0.0
    %v448 = vmax.f32 %v398, 0.0
    %v449 = vmax.f32 %v401, 0.0
    %v450 = vmax.f32 %v406, 0.0
    %v451 = vmax.f32 %v409, 0.0
    %v452 = vmax.f32 %v414, 0.0
    %v453 = vmax.f32 %v417, 0.0
    %v454 = vmax.f32 %v422, 0.0
    %v455 = vmax.f32 %v425, 0.0
    %v456 = vmax.f32 %v430, 0.0
    %v457 = vmax.f32 %v433, 0.0
    %v458 = vmax.f32 %v438, 0.0
    %v459 = vmax.f32 %v441, 0.0
    %v460 = vpack.c.bf16 %v445, %v444
    %v461 = vpack.c.bf16 %v447, %v446
    %v462 = vpack.c.bf16 %v449, %v448
    %v463 = vpack.c.bf16 %v451, %v450
    %v464 = vpack.c.bf16 %v453, %v452
    %v465 = vpack.c.bf16 %v455, %v454
    %v466 = vpack.c.bf16 %v457, %v456
    %v467 = vpack.c.bf16 %v459, %v458
    %v468 = vld [vmem:[%s5] sm:$0xf]
    %v469 = vld [vmem:[%s5 + $0x4] sm:$0xf]
    %v470 = vld [vmem:[%s5 + $0x8] sm:$0xf]
    %v471 = vld [vmem:[%s5 + $0xc] sm:$0xf]
    %v472 = vld [vmem:[%s5 + $0x10] sm:$0xf]
    %v473 = vld [vmem:[%s5 + $0x14] sm:$0xf]
    %v474 = vld [vmem:[%s5 + $0x18] sm:$0xf]
    %v475 = vld [vmem:[%s5 + $0x1c] sm:$0xf]
    %v476 = vld [vmem:[%s6] sm:$0x1]
    %v478 = vlaneseq
    %v479 = vshrl.u32 %v478, 7
    %v480 = vsub.s32 0, %v479
    %v481 = vrot.slane %v476, %v480
    %v491 = vunpack.c.l.b16 %v468
    %v492 = vunpack.c.l.b16 %v469
    %v493 = vunpack.c.l.b16 %v470
    %v494 = vunpack.c.l.b16 %v471
    %v495 = vunpack.c.l.b16 %v472
    %v496 = vunpack.c.l.b16 %v473
    %v497 = vunpack.c.l.b16 %v474
    %v498 = vunpack.c.l.b16 %v475
    %v499 = vpack.c.b16 %v492, %v491
    %v500 = vpack.c.b16 %v494, %v493
    %v501 = vpack.c.b16 %v496, %v495
    %v502 = vpack.c.b16 %v498, %v497
    %v508 = vsel %vm130, %v460, 0
    %v511 = vsel %vm130, %v461, 0
    %v514 = vsel %vm130, %v462, 0
    %v517 = vsel %vm130, %v463, 0
    %v520 = vsel %vm130, %v464, 0
    %v523 = vsel %vm130, %v465, 0
    %v526 = vsel %vm130, %v466, 0
    %v529 = vsel %vm130, %v467, 0
    %531 = vmatprep.subr.bf16.mxu0 0
    %532 = vmatpush1.bf16.msra.mxu0 %v499
    %533 = vmatprep.subr.bf16.mxu0 0
    %534 = vmatpush1.bf16.msra.mxu0 %v500
    %535 = vmatprep.subr.bf16.mxu0 0
    %536 = vmatpush1.bf16.msra.mxu0 %v501
    %537 = vmatprep.subr.bf16.mxu0 0
    %538 = vmatpush1.bf16.msra.mxu0 %v502
    %539 = vmatprep.subr.bf16.mxu0 0
    %540 = vmatpush1.bf16.msra.mxu0 0
    %541 = vmatprep.subr.bf16.mxu0 0
    %542 = vmatpush1.bf16.msra.mxu0 0
    %543 = vmatprep.subr.bf16.mxu0 0
    %544 = vmatpush1.bf16.msra.mxu0 0
    %545 = vmatprep.subr.bf16.mxu0 0
    %546 = vmatpush1.bf16.msra.mxu0 0
    %547 = vmatprep.subr.bf16.mxu0 0
    %548 = vmatpush1.bf16.msra.mxu0 0
    %549 = vmatprep.subr.bf16.mxu0 0
    %550 = vmatpush1.bf16.msra.mxu0 0
    %551 = vmatprep.subr.bf16.mxu0 0
    %552 = vmatpush1.bf16.msra.mxu0 0
    %553 = vmatprep.subr.bf16.mxu0 0
    %554 = vmatpush1.bf16.msra.mxu0 0
    %555 = vmatprep.subr.bf16.mxu0 0
    %556 = vmatpush1.bf16.msra.mxu0 0
    %557 = vmatprep.subr.bf16.mxu0 0
    %558 = vmatpush1.bf16.msra.mxu0 0
    %559 = vmatprep.subr.bf16.mxu0 0
    %560 = vmatpush1.bf16.msra.mxu0 0
    %561 = vmatprep.subr.bf16.mxu0 0
    %562 = vmatpush1.bf16.msra.mxu0 0
    %563 = vmatprep.mubr.bf16.mxu0 0
    %564 = vmatmul.mubr.bf16.gmra.mrb[0].mxu0 %v508
    %v565 = vpop.f32.mrb[0].mxu0
    %v566 = vadd.f32 %v481, %v565
    %v567 = vpop.f32.mrb[0].mxu0
    %v568 = vpop.f32.mrb[0].mxu0
    %v569 = vadd.f32 %v481, %v568
    %v570 = vpop.f32.mrb[0].mxu0
    %571 = vmatprep.mubr.bf16.mxu0 0
    %572 = vmatmul.mubr.bf16.gmra.mrb[0].mxu0 %v511
    %v573 = vpop.f32.mrb[0].mxu0
    %v574 = vadd.f32 %v481, %v573
    %v575 = vpop.f32.mrb[0].mxu0
    %v576 = vpop.f32.mrb[0].mxu0
    %v577 = vadd.f32 %v481, %v576
    %v578 = vpop.f32.mrb[0].mxu0
    %579 = vmatprep.mubr.bf16.mxu0 0
    %580 = vmatmul.mubr.bf16.gmra.mrb[0].mxu0 %v514
    %v581 = vpop.f32.mrb[0].mxu0
    %v582 = vadd.f32 %v481, %v581
    %v583 = vpop.f32.mrb[0].mxu0
    %v584 = vpop.f32.mrb[0].mxu0
    %v585 = vadd.f32 %v481, %v584
    %v586 = vpop.f32.mrb[0].mxu0
    %587 = vmatprep.mubr.bf16.mxu0 0
    %588 = vmatmul.mubr.bf16.gmra.mrb[0].mxu0 %v517
    %v589 = vpop.f32.mrb[0].mxu0
    %v590 = vadd.f32 %v481, %v589
    %v591 = vpop.f32.mrb[0].mxu0
    %v592 = vpop.f32.mrb[0].mxu0
    %v593 = vadd.f32 %v481, %v592
    %v594 = vpop.f32.mrb[0].mxu0
    %595 = vmatprep.mubr.bf16.mxu0 0
    %596 = vmatmul.mubr.bf16.gmra.mrb[0].mxu0 %v520
    %v597 = vpop.f32.mrb[0].mxu0
    %v598 = vadd.f32 %v481, %v597
    %v599 = vpop.f32.mrb[0].mxu0
    %v600 = vpop.f32.mrb[0].mxu0
    %v601 = vadd.f32 %v481, %v600
    %v602 = vpop.f32.mrb[0].mxu0
    %603 = vmatprep.mubr.bf16.mxu0 0
    %604 = vmatmul.mubr.bf16.gmra.mrb[0].mxu0 %v523
    %v605 = vpop.f32.mrb[0].mxu0
    %v606 = vadd.f32 %v481, %v605
    %v607 = vpop.f32.mrb[0].mxu0
    %v608 = vpop.f32.mrb[0].mxu0
    %v609 = vadd.f32 %v481, %v608
    %v610 = vpop.f32.mrb[0].mxu0
    %611 = vmatprep.mubr.bf16.mxu0 0
    %612 = vmatmul.mubr.bf16.gmra.mrb[0].mxu0 %v526
    %v613 = vpop.f32.mrb[0].mxu0
    %v614 = vadd.f32 %v481, %v613
    %v615 = vpop.f32.mrb[0].mxu0
    %v616 = vpop.f32.mrb[0].mxu0
    %v617 = vadd.f32 %v481, %v616
    %v618 = vpop.f32.mrb[0].mxu0
    %619 = vmatprep.mubr.bf16.mxu0 0
    %620 = vmatmul.mubr.bf16.gmra.mrb[0].mxu0 %v529
    %v621 = vpop.f32.mrb[0].mxu0
    %v622 = vadd.f32 %v481, %v621
    %v623 = vpop.f32.mrb[0].mxu0
    %v624 = vpop.f32.mrb[0].mxu0
    %v625 = vadd.f32 %v481, %v624
    %v626 = vpop.f32.mrb[0].mxu0
    %627 = vdwg.mxu0
    %v628 = vmax.f32 %v566, 0.0
    %v629 = vmax.f32 %v569, 0.0
    %v630 = vmax.f32 %v574, 0.0
    %v631 = vmax.f32 %v577, 0.0
    %v632 = vmax.f32 %v582, 0.0
    %v633 = vmax.f32 %v585, 0.0
    %v634 = vmax.f32 %v590, 0.0
    %v635 = vmax.f32 %v593, 0.0
    %v636 = vmax.f32 %v598, 0.0
    %v637 = vmax.f32 %v601, 0.0
    %v638 = vmax.f32 %v606, 0.0
    %v639 = vmax.f32 %v609, 0.0
    %v640 = vmax.f32 %v614, 0.0
    %v641 = vmax.f32 %v617, 0.0
    %v642 = vmax.f32 %v622, 0.0
    %v643 = vmax.f32 %v625, 0.0
    %v644 = vpack.c.bf16 %v629, %v628
    %v645 = vpack.c.bf16 %v631, %v630
    %v646 = vpack.c.bf16 %v633, %v632
    %v647 = vpack.c.bf16 %v635, %v634
    %v648 = vpack.c.bf16 %v637, %v636
    %v649 = vpack.c.bf16 %v639, %v638
    %v650 = vpack.c.bf16 %v641, %v640
    %v651 = vpack.c.bf16 %v643, %v642
    %v652 = vld [vmem:[%s7] sm:$0x1]
    %s653 = sld [smem:[#allocation2]]
    %v654 = vstv %s653
    %vm655 = vcmask 261120
    %v657 = vsel %vm655, %v652, 0
    %v660 = vsel %vm655, %v644, 0
    %v663 = vsel %vm655, %v645, 0
    %v666 = vsel %vm655, %v646, 0
    %v669 = vsel %vm655, %v647, 0
    %v672 = vsel %vm655, %v648, 0
    %v675 = vsel %vm655, %v649, 0
    %v678 = vsel %vm655, %v650, 0
    %v681 = vsel %vm655, %v651, 0
    %683 = vmatprep.subr.bf16.mxu0 0
    %684 = vmatpush1.bf16.xpose.msra.mxu0 %v660
    %685 = vmatprep.subr.bf16.mxu0 0
    %686 = vmatpush1.bf16.xpose.msra.mxu0 %v663
    %687 = vmatprep.subr.bf16.mxu0 0
    %688 = vmatpush1.bf16.xpose.msra.mxu0 %v666
    %689 = vmatprep.subr.bf16.mxu0 0
    %690 = vmatpush1.bf16.xpose.msra.mxu0 %v669
    %691 = vmatprep.subr.bf16.mxu0 0
    %692 = vmatpush1.bf16.xpose.msra.mxu0 %v672
    %693 = vmatprep.subr.bf16.mxu0 0
    %694 = vmatpush1.bf16.xpose.msra.mxu0 %v675
    %695 = vmatprep.subr.bf16.mxu0 0
    %696 = vmatpush1.bf16.xpose.msra.mxu0 %v678
    %697 = vmatprep.subr.bf16.mxu0 0
    %698 = vmatpush1.bf16.xpose.msra.mxu0 %v681
    %699 = vmatprep.subr.bf16.mxu0 0
    %700 = vmatpush1.bf16.xpose.msra.mxu0 0
    %701 = vmatprep.subr.bf16.mxu0 0
    %702 = vmatpush1.bf16.xpose.msra.mxu0 0
    %703 = vmatprep.subr.bf16.mxu0 0
    %704 = vmatpush1.bf16.xpose.msra.mxu0 0
    %705 = vmatprep.subr.bf16.mxu0 0
    %706 = vmatpush1.bf16.xpose.msra.mxu0 0
    %707 = vmatprep.subr.bf16.mxu0 0
    %708 = vmatpush1.bf16.xpose.msra.mxu0 0
    %709 = vmatprep.subr.bf16.mxu0 0
    %710 = vmatpush1.bf16.xpose.msra.mxu0 0
    %711 = vmatprep.subr.bf16.mxu0 0
    %712 = vmatpush1.bf16.xpose.msra.mxu0 0
    %713 = vmatprep.subr.bf16.mxu0 0
    %714 = vmatpush1.bf16.xpose.msra.mxu0 0
    %715 = vmatprep.mubr.bf16.mxu0 0
    %716 = vmatmul.mubr.bf16.gmra.mrb[0].mxu0 %v657
    %v717 = vpop.f32.mrb[0].mxu0
    %v718 = vadd.f32 %v654, %v717
    %v719 = vpop.f32.mrb[0].mxu0
    %v720 = vpop.f32.mrb[0].mxu0
    %v721 = vpop.f32.mrb[0].mxu0
    %722 = vdwg.mxu0
    %723 = vst [vmem:[#allocation3] sm:$0x1] %v718
    // Predicated region
    $region38: #{tpu_custom_call.1} parent=1 // pred_check
      _
    $region39: #{tpu_custom_call.1} parent=1 // pred_check_branch
      %725 = sbr.rel (0) target = $region41
    $region40: #{tpu_custom_call.1} parent=1 // pred_region
      %s727 = ssub.s32 16, 16
      %728 = vsyncadd [#allocation4], %s727
      %s730 = sshll.u32 [#allocation3], 4
      %s731 = int_to_ptr.vmem [resolvable:$true] %s730
      %733 = dma.vmem_to_hbm [thread:$0]  %s731, 16, %s9, [#allocation4]
    $region41: #{tpu_custom_call.1} parent=1 // pred_fallthru
      _
    // Predicated region
    $region42: #{tpu_custom_call.1} parent=1 // pred_check
      _
    $region43: #{tpu_custom_call.1} parent=1 // pred_check_branch
      %735 = sbr.rel (0) target = $region45
    $region44: #{tpu_custom_call.1} parent=1 // pred_region
      %736 = dma.done [#allocation4], 16
    $region45: #{tpu_custom_call.1} parent=1 // pred_fallthru
      _
    %737 = vsyncpa [#allocation4], 1

</llo_original>
